<compile_context>
chip_gen: v6e
topology: v6e:2x2x1
jax: 0.10.0
libtpu: 0.0.40
codegen_flags: <defaults>
</compile_context>

<pallas_src>
import functools

import numpy as np
import jax
import jax.numpy as jnp
from jax.experimental import pallas as pl
from jax.experimental.pallas import tpu as pltpu


# Conservative per-TensorCore VMEM budget: v7x has 64 MiB/TC (v5e/v6e have 128 MiB).
_VMEM_BUDGET = 48 * 1024 * 1024
_MAX_BLOCK_M = 512      # 512-row f32 tiles measured near the HBM roofline


def _round_up(x, n):
    return ((x + n - 1) // n) * n


def _choose_block_m(m_rows, per_row_bytes, act_budget):
    """Row tile: as large as the activation VMEM budget allows, capped at 512,
    sublane(8)-aligned.  Small M stays a single step (splitting an already-tiny M
    starves the MXU and only adds ~0.35us/step); large M naturally yields >=2 steps
    so v7x megacore sharding via dimension_semantics=('parallel',) still applies."""
    cap = max(8, (act_budget // max(per_row_bytes, 1)) // 8 * 8)
    bm = min(_MAX_BLOCK_M, cap)
    if m_rows <= bm:
        return max(8, _round_up(m_rows, 8))
    return bm


def _pick_block_hidden(hidden, d_model, wbytes):
    """Hidden tile for the k-tiled fallback: double-buffered w1/w2 slabs per step must
    fit well within the weight share of the VMEM budget; multiple of 128 dividing hidden."""
    if hidden % 128 != 0:
        return hidden                      # full-extent block is always legal
    budget = _VMEM_BUDGET // 2
    per128 = 2 * (2 * d_model * 128) * wbytes   # dbl-buffered (w1+w2) slab per 128 hidden
    mult = max(1, budget // max(per128, 1))
    bh = min(hidden, (128 * mult) // 128 * 128)
    while bh > 128 and hidden % bh != 0:
        bh -= 128
    return max(bh, 128)


# ------------------------------------------------------------------------- kernels

def _ffn_fused_kernel(x_ref, w1_ref, b1_ref, w2_ref, b2_ref, o_ref):
    # Faithful to FFN.forward: no activation between the linears, ReLU after layer2.
    # Operands arrive already in the MXU compute dtype (bf16); biases/accum in f32.
    h = jnp.dot(x_ref[...], w1_ref[...], preferred_element_type=jnp.float32) + b1_ref[...]
    y = jnp.dot(h.astype(w2_ref.dtype), w2_ref[...],
                preferred_element_type=jnp.float32) + b2_ref[...]
    o_ref[...] = jnp.maximum(y, 0.0).astype(o_ref.dtype)


def _ffn_ktiled_kernel(x_ref, w1_ref, b1_ref, w2_ref, b2_ref, o_ref, acc_ref):
    # Hidden-axis tiled fallback: layer1 produces a hidden slice, layer2 accumulates
    # into an f32 scratch; bias2 + ReLU + store only on the last k step.
    k = pl.program_id(1)

    @pl.when(k == 0)
    def _():
        acc_ref[...] = jnp.zeros_like(acc_ref)

    h = jnp.dot(x_ref[...], w1_ref[...], preferred_element_type=jnp.float32) + b1_ref[...]
    acc_ref[...] += jnp.dot(h.astype(w2_ref.dtype), w2_ref[...],
                            preferred_element_type=jnp.float32)

    @pl.when(k == pl.num_programs(1) - 1)
    def _():
        o_ref[...] = jnp.maximum(acc_ref[...] + b2_ref[...], 0.0).astype(o_ref.dtype)


# ------------------------------------------------------------------------- wrapper

def ffn(x, w1, b1, w2, b2, *, compute_dtype=jnp.bfloat16, block_m=None, block_hidden=None):
    """x: (..., d_model); w1: (d_model, hidden); b1: (1, hidden);
       w2: (hidden, d_model); b2: (1, d_model).  Returns relu(layer2(layer1(x)))."""
    d_model, hidden = w1.shape
    assert w2.shape == (hidden, d_model), (w1.shape, w2.shape)
    out_dtype = x.dtype
    orig_shape = x.shape
    x2d = x.reshape(-1, d_model)
    m = x2d.shape[0]

    # Pre-cast once in the wrapper (halves weight DMA/VMEM, removes per-step casts).
    cbytes = jnp.dtype(compute_dtype).itemsize
    out_bytes = jnp.dtype(out_dtype).itemsize
    x2d = x2d.astype(compute_dtype)
    w1c = w1.astype(compute_dtype)
    w2c = w2.astype(compute_dtype)
    b1c = b1.reshape(1, hidden).astype(jnp.float32)
    b2c = b2.reshape(1, d_model).astype(jnp.float32)

    # Resident (fused-path) weight footprint, conservatively assuming the pipeliner
    # double-buffers even constant-index blocks.
    resident_w = 2 * ((2 * d_model * hidden) * cbytes + (hidden + d_model) * 4)

    use_ktiled = ((block_hidden is not None and block_hidden < hidden)
                  or resident_w > _VMEM_BUDGET * 3 // 4)

    if not use_ktiled:
        per_row = d_model * (2 * cbytes + 2 * out_bytes + 4) + hidden * (4 + cbytes)
        bm = block_m or _choose_block_m(m, per_row, _VMEM_BUDGET - resident_w)
        footprint = resident_w + bm * per_row
    else:
        bh = block_hidden or _pick_block_hidden(hidden, d_model, cbytes)
        assert hidden % bh == 0 and (bh == hidden or bh % 128 == 0), (hidden, bh)
        step_w = 2 * ((2 * d_model * bh) * cbytes + (bh + d_model) * 4)
        per_row = d_model * (2 * cbytes + 2 * out_bytes + 4 + 4) + bh * (4 + cbytes)
        bm = block_m or _choose_block_m(m, per_row, _VMEM_BUDGET - step_w)
        footprint = step_w + bm * per_row

    # Pad rows to the (sublane-aligned) row tile so the block divides the array.
    m_pad = _round_up(m, bm)
    if m_pad != m:
        x2d = jnp.pad(x2d, ((0, m_pad - m), (0, 0)))

    vmem_limit = int(min(max(footprint * 3 // 2, 32 * 1024 * 1024), 56 * 1024 * 1024))
    cost = pl.CostEstimate(
        flops=4 * m * d_model * hidden,
        transcendentals=0,
        bytes_accessed=(m * d_model * (cbytes + out_bytes)
                        + 2 * d_model * hidden * cbytes + (hidden + d_model) * 4))

    if not use_ktiled:
        out = pl.pallas_call(
            _ffn_fused_kernel,
            out_shape=jax.ShapeDtypeStruct((m_pad, d_model), out_dtype),
            grid=(m_pad // bm,),
            in_specs=[
                pl.BlockSpec((bm, d_model), lambda i: (i, 0)),       # x rows (pipelined)
                pl.BlockSpec((d_model, hidden), lambda i: (0, 0)),   # w1 (resident, bf16)
                pl.BlockSpec((1, hidden), lambda i: (0, 0)),         # b1 (resident, f32)
                pl.BlockSpec((hidden, d_model), lambda i: (0, 0)),   # w2 (resident, bf16)
                pl.BlockSpec((1, d_model), lambda i: (0, 0)),        # b2 (resident, f32)
            ],
            out_specs=pl.BlockSpec((bm, d_model), lambda i: (i, 0)),
            compiler_params=pltpu.CompilerParams(
                dimension_semantics=("parallel",),
                vmem_limit_bytes=vmem_limit),
            cost_estimate=cost,
        )(x2d, w1c, b1c, w2c, b2c)
    else:
        out = pl.pallas_call(
            _ffn_ktiled_kernel,
            out_shape=jax.ShapeDtypeStruct((m_pad, d_model), out_dtype),
            grid=(m_pad // bm, hidden // bh),                         # reduction axis last
            in_specs=[
                pl.BlockSpec((bm, d_model), lambda i, k: (i, 0)),     # x rows
                pl.BlockSpec((d_model, bh), lambda i, k: (0, k)),     # w1 hidden slice
                pl.BlockSpec((1, bh), lambda i, k: (0, k)),           # b1 hidden slice
                pl.BlockSpec((bh, d_model), lambda i, k: (k, 0)),     # w2 hidden slice
                pl.BlockSpec((1, d_model), lambda i, k: (0, 0)),      # b2
            ],
            out_specs=pl.BlockSpec((bm, d_model), lambda i, k: (i, 0)),
            scratch_shapes=[pltpu.VMEM((bm, d_model), jnp.float32)],  # f32 accumulator
            compiler_params=pltpu.CompilerParams(
                dimension_semantics=("parallel", "arbitrary"),
                vmem_limit_bytes=vmem_limit),
            cost_estimate=cost,
        )(x2d, w1c, b1c, w2c, b2c)

    if m_pad != m:
        out = out[:m]
    return out.reshape(orig_shape)


# --------------------------------------------------------------------------- main

if __name__ == "__main__":
    # Small shapes consistent with the module; d_model is a multiple of 128 so the
    # output slab is lane-dense (unmasked vector stores).
    B, S = 2, 8
    d_model, hidden_dim = 128, 256

    key = jax.random.PRNGKey(0)
    kx, kw1, kb1, kw2, kb2 = jax.random.split(key, 5)

    x = jax.random.normal(kx, (B, S, d_model), jnp.float32)
    # PyTorch nn.Linear default init: U(-1/sqrt(fan_in), 1/sqrt(fan_in))
    lim1 = 1.0 / np.sqrt(d_model)
    lim2 = 1.0 / np.sqrt(hidden_dim)
    w1 = jax.random.uniform(kw1, (d_model, hidden_dim), jnp.float32, -lim1, lim1)
    b1 = jax.random.uniform(kb1, (1, hidden_dim), jnp.float32, -lim1, lim1)
    w2 = jax.random.uniform(kw2, (hidden_dim, d_model), jnp.float32, -lim2, lim2)
    b2 = jax.random.uniform(kb2, (1, d_model), jnp.float32, -lim2, lim2)

    # pure-JAX f32 reference of FFN.forward (relu only after layer2)
    ref = jnp.maximum(jnp.dot(jnp.dot(x, w1) + b1[0], w2) + b2[0], 0.0)

    # main path: fully fused, resident bf16 weights
    out = jax.block_until_ready(jax.jit(ffn)(x, w1, b1, w2, b2))
    assert out.shape == (B, S, d_model), out.shape
    assert bool(jnp.all(jnp.isfinite(out)))
    np.testing.assert_allclose(np.asarray(out), np.asarray(ref), rtol=5e-2, atol=5e-2)

    # hidden-tiled fallback path (used automatically when 2*d*h weights exceed the per-TC
    # VMEM budget, e.g. real transformer FFN sizes on v7x) -- exercised here at small shapes.
    out_kt = jax.block_until_ready(
        jax.jit(functools.partial(ffn, block_hidden=128))(x, w1, b1, w2, b2))
    np.testing.assert_allclose(np.asarray(out_kt), np.asarray(ref), rtol=5e-2, atol=5e-2)

    print("KERNEL_OK")
</pallas_src>

<mosaic_0001>
module attributes {stable_mosaic.version = 11 : i64} {
  func.func @_ffn_fused_kernel(%arg0: i32, %arg1: memref<16x128xbf16, #tpu.memory_space<vmem>>, %arg2: memref<128x256xbf16, #tpu.memory_space<vmem>>, %arg3: memref<1x256xf32, #tpu.memory_space<vmem>>, %arg4: memref<256x128xbf16, #tpu.memory_space<vmem>>, %arg5: memref<1x128xf32, #tpu.memory_space<vmem>>, %arg6: memref<16x128xf32, #tpu.memory_space<vmem>>) attributes {dimension_semantics = [#tpu.dimension_semantics<parallel>], iteration_bounds = array<i64: 1>, scalar_prefetch = 0 : i64, scratch_operands = 0 : i64, tpu.core_type = #tpu.core_type<tc>, window_params = [{transform_indices = @transform_0, window_bounds = array<i64: 16, 128>}, {pipeline_mode = #tpu.pipeline_mode<synchronous>, transform_indices = @transform_1, window_bounds = array<i64: 128, 256>}, {pipeline_mode = #tpu.pipeline_mode<synchronous>, transform_indices = @transform_2, window_bounds = array<i64: 1, 256>}, {pipeline_mode = #tpu.pipeline_mode<synchronous>, transform_indices = @transform_3, window_bounds = array<i64: 256, 128>}, {pipeline_mode = #tpu.pipeline_mode<synchronous>, transform_indices = @transform_4, window_bounds = array<i64: 1, 128>}, {transform_indices = @transform_5, window_bounds = array<i64: 16, 128>}]} {
    %c0 = arith.constant 0 : index
    %c0_0 = arith.constant 0 : index
    %0 = vector.load %arg1[%c0, %c0_0] : memref<16x128xbf16, #tpu.memory_space<vmem>>, vector<16x128xbf16>
    %c0_1 = arith.constant 0 : index
    %c0_2 = arith.constant 0 : index
    %1 = vector.load %arg2[%c0_1, %c0_2] : memref<128x256xbf16, #tpu.memory_space<vmem>>, vector<128x256xbf16>
    %cst = arith.constant dense<0.000000e+00> : vector<16x256xf32>
    %2 = tpu.matmul %0, %1, %cst {dimension_numbers = #tpu.dot_dimension_numbers<[1], [0], [0], [1], [0, 0, 1, 1], [], []>} : vector<16x128xbf16>, vector<128x256xbf16>, vector<16x256xf32> -> vector<16x256xf32>
    %c0_3 = arith.constant 0 : index
    %c0_4 = arith.constant 0 : index
    %3 = vector.load %arg3[%c0_3, %c0_4] : memref<1x256xf32, #tpu.memory_space<vmem>>, vector<1x256xf32>
    %4 = vector.broadcast %3 : vector<1x256xf32> to vector<16x256xf32>
    %5 = arith.addf %2, %4 : vector<16x256xf32>
    %6 = arith.truncf %5 : vector<16x256xf32> to vector<16x256xbf16>
    %c0_5 = arith.constant 0 : index
    %c0_6 = arith.constant 0 : index
    %7 = vector.load %arg4[%c0_5, %c0_6] : memref<256x128xbf16, #tpu.memory_space<vmem>>, vector<256x128xbf16>
    %cst_7 = arith.constant dense<0.000000e+00> : vector<16x128xf32>
    %8 = tpu.matmul %6, %7, %cst_7 {dimension_numbers = #tpu.dot_dimension_numbers<[1], [0], [0], [1], [0, 0, 1, 1], [], []>} : vector<16x256xbf16>, vector<256x128xbf16>, vector<16x128xf32> -> vector<16x128xf32>
    %c0_8 = arith.constant 0 : index
    %c0_9 = arith.constant 0 : index
    %9 = vector.load %arg5[%c0_8, %c0_9] : memref<1x128xf32, #tpu.memory_space<vmem>>, vector<1x128xf32>
    %10 = vector.broadcast %9 : vector<1x128xf32> to vector<16x128xf32>
    %11 = arith.addf %8, %10 : vector<16x128xf32>
    %cst_10 = arith.constant 0.000000e+00 : f32
    %12 = vector.broadcast %cst_10 : f32 to vector<16x128xf32>
    %13 = arith.maximumf %11, %12 : vector<16x128xf32>
    %c0_11 = arith.constant 0 : index
    %c0_12 = arith.constant 0 : index
    %14 = vector.load %arg6[%c0_11, %c0_12] : memref<16x128xf32, #tpu.memory_space<vmem>>, vector<16x128xf32>
    tpu.vector_store %arg6[%c0_11, %c0_12], %13 {strides = array<i32>} : memref<16x128xf32, #tpu.memory_space<vmem>>, vector<16x128xf32>,
    return
  }
  func.func @transform_0(%arg0: i32) -> (i32, i32) {
    %c0_i32 = arith.constant 0 : i32
    %c0_i32_0 = arith.constant 0 : i32
    return %arg0, %c0_i32 : i32, i32
  }
  func.func @transform_1(%arg0: i32) -> (i32, i32) {
    %c0_i32 = arith.constant 0 : i32
    %c0_i32_0 = arith.constant 0 : i32
    %c0_i32_1 = arith.constant 0 : i32
    return %c0_i32, %c0_i32_0 : i32, i32
  }
  func.func @transform_2(%arg0: i32) -> (i32, i32) {
    %c0_i32 = arith.constant 0 : i32
    %c0_i32_0 = arith.constant 0 : i32
    %c0_i32_1 = arith.constant 0 : i32
    return %c0_i32, %c0_i32_0 : i32, i32
  }
  func.func @transform_3(%arg0: i32) -> (i32, i32) {
    %c0_i32 = arith.constant 0 : i32
    %c0_i32_0 = arith.constant 0 : i32
    %c0_i32_1 = arith.constant 0 : i32
    return %c0_i32, %c0_i32_0 : i32, i32
  }
  func.func @transform_4(%arg0: i32) -> (i32, i32) {
    %c0_i32 = arith.constant 0 : i32
    %c0_i32_0 = arith.constant 0 : i32
    %c0_i32_1 = arith.constant 0 : i32
    return %c0_i32, %c0_i32_0 : i32, i32
  }
  func.func @transform_5(%arg0: i32) -> (i32, i32) {
    %c0_i32 = arith.constant 0 : i32
    %c0_i32_0 = arith.constant 0 : i32
    return %arg0, %c0_i32 : i32, i32
  }
}

</mosaic_0001>

<llo_original>
// kernel: ffn.1
$region0: #{ffn.1}
  #allocation0 [shape = 'u32[]', space=smem, size = 0x4, offset = 0x4, fixed_abs, tag = 'smem constant byte address 0x4 - core index']
  #allocation1 [shape = 'u32[144,128]{1,0:T(1,128)}', space=vmem, size = 0x12000, scoped, tag = 'internal scratch']
  %s0 = inlined_call_operand.vmem [shape: bf16[16,128], index: 0, kind: input, shape index: {}]
  %s1 = inlined_call_operand.vmem [shape: bf16[128,256], index: 1, kind: input, shape index: {}]
  %s2 = inlined_call_operand.vmem [shape: f32[1,256], index: 2, kind: input, shape index: {}]
  %s3 = inlined_call_operand.vmem [shape: bf16[256,128], index: 3, kind: input, shape index: {}]
  %s4 = inlined_call_operand.vmem [shape: f32[1,128], index: 4, kind: input, shape index: {}]
  %s5 = inlined_call_operand.hbm [shape: f32[16,128], index: 5, kind: output, shape index: {}]
  %s6 = sld [smem:[#allocation0]]
  $region30: #{ffn.1} parent=0
    _
  %s8 = ssub.s32 1, %s6
  %s9 = scalar_select 0, %s8, %s6
  $region1: #{ffn.1} parent=0
    #allocation2 [shape = 'u8[8192]{0}', space=vmem, size = 0x2000, scoped, tag = 'output window, operand 0, single buffered']
    #allocation3 [shape = 's32[1]{0}', space=sflag, size = 0x4, scoped, tag = 'scoped memory for ffn.1']
    %10 = vsyncpa [#allocation3], 0
    // Predicated region
    $region2: #{ffn.1} parent=1 // pred_check
      _
    $region3: #{ffn.1} parent=1 // pred_check_branch
      %12 = sbr.rel (0) target = $region5
    $region4: #{ffn.1} parent=1 // pred_region
      _
    $region5: #{ffn.1} parent=1 // pred_fallthru
      _
    // Predicated region
    $region6: #{ffn.1} parent=1 // pred_check
      _
    $region7: #{ffn.1} parent=1 // pred_check_branch
      %14 = sbr.rel (0) target = $region9
    $region8: #{ffn.1} parent=1 // pred_region
      _
    $region9: #{ffn.1} parent=1 // pred_fallthru
      _
    // Predicated region
    $region10: #{ffn.1} parent=1 // pred_check
      _
    $region11: #{ffn.1} parent=1 // pred_check_branch
      %16 = sbr.rel (0) target = $region13
    $region12: #{ffn.1} parent=1 // pred_region
      _
    $region13: #{ffn.1} parent=1 // pred_fallthru
      _
    // Predicated region
    $region14: #{ffn.1} parent=1 // pred_check
      _
    $region15: #{ffn.1} parent=1 // pred_check_branch
      %18 = sbr.rel (0) target = $region17
    $region16: #{ffn.1} parent=1 // pred_region
      _
    $region17: #{ffn.1} parent=1 // pred_fallthru
      _
    // Predicated region
    $region18: #{ffn.1} parent=1 // pred_check
      _
    $region19: #{ffn.1} parent=1 // pred_check_branch
      %20 = sbr.rel (0) target = $region21
    $region20: #{ffn.1} parent=1 // pred_region
      _
    $region21: #{ffn.1} parent=1 // pred_fallthru
      _
    %v22 = vld [vmem:[%s0] sm:$0xf]
    %v23 = vld [vmem:[%s0 + $0x4] sm:$0xf]
    %v24 = vld [vmem:[%s1] sm:$0xff]
    %v25 = vld [vmem:[%s1 + $0x8] sm:$0xff]
    %v26 = vld [vmem:[%s1 + $0x10] sm:$0xff]
    %v27 = vld [vmem:[%s1 + $0x18] sm:$0xff]
    %v28 = vld [vmem:[%s1 + $0x20] sm:$0xff]
    %v29 = vld [vmem:[%s1 + $0x28] sm:$0xff]
    %v30 = vld [vmem:[%s1 + $0x30] sm:$0xff]
    %v31 = vld [vmem:[%s1 + $0x38] sm:$0xff]
    %v32 = vld [vmem:[%s1 + $0x40] sm:$0xff]
    %v33 = vld [vmem:[%s1 + $0x48] sm:$0xff]
    %v34 = vld [vmem:[%s1 + $0x50] sm:$0xff]
    %v35 = vld [vmem:[%s1 + $0x58] sm:$0xff]
    %v36 = vld [vmem:[%s1 + $0x60] sm:$0xff]
    %v37 = vld [vmem:[%s1 + $0x68] sm:$0xff]
    %v38 = vld [vmem:[%s1 + $0x70] sm:$0xff]
    %v39 = vld [vmem:[%s1 + $0x78] sm:$0xff]
    %v40 = vld [vmem:[%s2] sm:$0x3]
    %v42 = vlaneseq
    %v43 = vshrl.u32 %v42, 7
    %v44 = vsub.s32 0, %v43
    %v45 = vrot.slane %v40, %v44
    %v46 = vlaneseq
    %v47 = vshrl.u32 %v46, 7
    %v48 = vsub.s32 1, %v47
    %v49 = vrot.slane %v40, %v48
    %v54 = vunpack.c.l.b16 %v22
    %v55 = vunpack.c.l.b16 %v23
    %v56 = vpack.c.b16 %v55, %v54
    %v74 = vunpack.c.l.b16 %v24
    %v75 = vunpack.c.h.b16 %v24
    %v76 = vunpack.c.l.b16 %v25
    %v77 = vunpack.c.h.b16 %v25
    %v78 = vunpack.c.l.b16 %v26
    %v79 = vunpack.c.h.b16 %v26
    %v80 = vunpack.c.l.b16 %v27
    %v81 = vunpack.c.h.b16 %v27
    %v82 = vunpack.c.l.b16 %v28
    %v83 = vunpack.c.h.b16 %v28
    %v84 = vunpack.c.l.b16 %v29
    %v85 = vunpack.c.h.b16 %v29
    %v86 = vunpack.c.l.b16 %v30
    %v87 = vunpack.c.h.b16 %v30
    %v88 = vunpack.c.l.b16 %v31
    %v89 = vunpack.c.h.b16 %v31
    %v90 = vunpack.c.l.b16 %v32
    %v91 = vunpack.c.h.b16 %v32
    %v92 = vunpack.c.l.b16 %v33
    %v93 = vunpack.c.h.b16 %v33
    %v94 = vunpack.c.l.b16 %v34
    %v95 = vunpack.c.h.b16 %v34
    %v96 = vunpack.c.l.b16 %v35
    %v97 = vunpack.c.h.b16 %v35
    %v98 = vunpack.c.l.b16 %v36
    %v99 = vunpack.c.h.b16 %v36
    %v100 = vunpack.c.l.b16 %v37
    %v101 = vunpack.c.h.b16 %v37
    %v102 = vunpack.c.l.b16 %v38
    %v103 = vunpack.c.h.b16 %v38
    %v104 = vunpack.c.l.b16 %v39
    %v105 = vunpack.c.h.b16 %v39
    %v106 = vpack.c.b16 %v76, %v74
    %v107 = vpack.c.b16 %v77, %v75
    %v108 = vpack.c.b16 %v80, %v78
    %v109 = vpack.c.b16 %v81, %v79
    %v110 = vpack.c.b16 %v84, %v82
    %v111 = vpack.c.b16 %v85, %v83
    %v112 = vpack.c.b16 %v88, %v86
    %v113 = vpack.c.b16 %v89, %v87
    %v114 = vpack.c.b16 %v92, %v90
    %v115 = vpack.c.b16 %v93, %v91
    %v116 = vpack.c.b16 %v96, %v94
    %v117 = vpack.c.b16 %v97, %v95
    %v118 = vpack.c.b16 %v100, %v98
    %v119 = vpack.c.b16 %v101, %v99
    %v120 = vpack.c.b16 %v104, %v102
    %v121 = vpack.c.b16 %v105, %v103
    %138 = vmatprep.subr.bf16.mxu0 %v121
    %139 = vmatpush1.bf16.msra.mxu0 %v120
    %140 = vmatprep.subr.bf16.mxu0 %v119
    %141 = vmatpush1.bf16.msra.mxu0 %v118
    %142 = vmatprep.subr.bf16.mxu0 %v117
    %143 = vmatpush1.bf16.msra.mxu0 %v116
    %144 = vmatprep.subr.bf16.mxu0 %v115
    %145 = vmatpush1.bf16.msra.mxu0 %v114
    %146 = vmatprep.subr.bf16.mxu0 %v113
    %147 = vmatpush1.bf16.msra.mxu0 %v112
    %148 = vmatprep.subr.bf16.mxu0 %v111
    %149 = vmatpush1.bf16.msra.mxu0 %v110
    %150 = vmatprep.subr.bf16.mxu0 %v109
    %151 = vmatpush1.bf16.msra.mxu0 %v108
    %152 = vmatprep.subr.bf16.mxu0 %v107
    %153 = vmatpush1.bf16.msra.mxu0 %v106
    %154 = vmatprep.subr.bf16.mxu0 0
    %155 = vmatpush2.bf16.msra.mxu0 0
    %156 = vmatprep.subr.bf16.mxu0 0
    %157 = vmatpush2.bf16.msra.mxu0 0
    %158 = vmatprep.subr.bf16.mxu0 0
    %159 = vmatpush2.bf16.msra.mxu0 0
    %160 = vmatprep.subr.bf16.mxu0 0
    %161 = vmatpush2.bf16.msra.mxu0 0
    %162 = vmatprep.subr.bf16.mxu0 0
    %163 = vmatpush2.bf16.msra.mxu0 0
    %164 = vmatprep.subr.bf16.mxu0 0
    %165 = vmatpush2.bf16.msra.mxu0 0
    %166 = vmatprep.subr.bf16.mxu0 0
    %167 = vmatpush2.bf16.msra.mxu0 0
    %168 = vmatprep.subr.bf16.mxu0 0
    %169 = vmatpush2.bf16.msra.mxu0 0
    %170 = vmatprep.mubr.bf16.mxu0 0
    %171 = vmatmul.mubr.bf16.gmra.mxu0 %v56
    %v172 = vpop.f32.mrf.mxu0
    %v173 = vadd.f32 %v45, %v172
    %v174 = vpop.f32.mrf.mxu0
    %v175 = vadd.f32 %v49, %v174
    %v176 = vpop.f32.mrf.mxu0
    %v177 = vadd.f32 %v45, %v176
    %v178 = vpop.f32.mrf.mxu0
    %v179 = vadd.f32 %v49, %v178
    %180 = vdwg.mxu0
    %v181 = vpack.c.bf16 %v177, %v173
    %v182 = vpack.c.bf16 %v179, %v175
    %v183 = vld [vmem:[%s3] sm:$0xf]
    %v184 = vld [vmem:[%s3 + $0x4] sm:$0xf]
    %v185 = vld [vmem:[%s3 + $0x8] sm:$0xf]
    %v186 = vld [vmem:[%s3 + $0xc] sm:$0xf]
    %v187 = vld [vmem:[%s3 + $0x10] sm:$0xf]
    %v188 = vld [vmem:[%s3 + $0x14] sm:$0xf]
    %v189 = vld [vmem:[%s3 + $0x18] sm:$0xf]
    %v190 = vld [vmem:[%s3 + $0x1c] sm:$0xf]
    %v191 = vld [vmem:[%s3 + $0x20] sm:$0xf]
    %v192 = vld [vmem:[%s3 + $0x24] sm:$0xf]
    %v193 = vld [vmem:[%s3 + $0x28] sm:$0xf]
    %v194 = vld [vmem:[%s3 + $0x2c] sm:$0xf]
    %v195 = vld [vmem:[%s3 + $0x30] sm:$0xf]
    %v196 = vld [vmem:[%s3 + $0x34] sm:$0xf]
    %v197 = vld [vmem:[%s3 + $0x38] sm:$0xf]
    %v198 = vld [vmem:[%s3 + $0x3c] sm:$0xf]
    %v199 = vld [vmem:[%s3 + $0x40] sm:$0xf]
    %v200 = vld [vmem:[%s3 + $0x44] sm:$0xf]
    %v201 = vld [vmem:[%s3 + $0x48] sm:$0xf]
    %v202 = vld [vmem:[%s3 + $0x4c] sm:$0xf]
    %v203 = vld [vmem:[%s3 + $0x50] sm:$0xf]
    %v204 = vld [vmem:[%s3 + $0x54] sm:$0xf]
    %v205 = vld [vmem:[%s3 + $0x58] sm:$0xf]
    %v206 = vld [vmem:[%s3 + $0x5c] sm:$0xf]
    %v207 = vld [vmem:[%s3 + $0x60] sm:$0xf]
    %v208 = vld [vmem:[%s3 + $0x64] sm:$0xf]
    %v209 = vld [vmem:[%s3 + $0x68] sm:$0xf]
    %v210 = vld [vmem:[%s3 + $0x6c] sm:$0xf]
    %v211 = vld [vmem:[%s3 + $0x70] sm:$0xf]
    %v212 = vld [vmem:[%s3 + $0x74] sm:$0xf]
    %v213 = vld [vmem:[%s3 + $0x78] sm:$0xf]
    %v214 = vld [vmem:[%s3 + $0x7c] sm:$0xf]
    %v215 = vld [vmem:[%s4] sm:$0x1]
    %v217 = vlaneseq
    %v218 = vshrl.u32 %v217, 7
    %v219 = vsub.s32 0, %v218
    %v220 = vrot.slane %v215, %v219
    %v254 = vunpack.c.l.b16 %v183
    %v255 = vunpack.c.l.b16 %v184
    %v256 = vunpack.c.l.b16 %v185
    %v257 = vunpack.c.l.b16 %v186
    %v258 = vunpack.c.l.b16 %v187
    %v259 = vunpack.c.l.b16 %v188
    %v260 = vunpack.c.l.b16 %v189
    %v261 = vunpack.c.l.b16 %v190
    %v262 = vunpack.c.l.b16 %v191
    %v263 = vunpack.c.l.b16 %v192
    %v264 = vunpack.c.l.b16 %v193
    %v265 = vunpack.c.l.b16 %v194
    %v266 = vunpack.c.l.b16 %v195
    %v267 = vunpack.c.l.b16 %v196
    %v268 = vunpack.c.l.b16 %v197
    %v269 = vunpack.c.l.b16 %v198
    %v270 = vunpack.c.l.b16 %v199
    %v271 = vunpack.c.l.b16 %v200
    %v272 = vunpack.c.l.b16 %v201
    %v273 = vunpack.c.l.b16 %v202
    %v274 = vunpack.c.l.b16 %v203
    %v275 = vunpack.c.l.b16 %v204
    %v276 = vunpack.c.l.b16 %v205
    %v277 = vunpack.c.l.b16 %v206
    %v278 = vunpack.c.l.b16 %v207
    %v279 = vunpack.c.l.b16 %v208
    %v280 = vunpack.c.l.b16 %v209
    %v281 = vunpack.c.l.b16 %v210
    %v282 = vunpack.c.l.b16 %v211
    %v283 = vunpack.c.l.b16 %v212
    %v284 = vunpack.c.l.b16 %v213
    %v285 = vunpack.c.l.b16 %v214
    %v286 = vpack.c.b16 %v255, %v254
    %v287 = vpack.c.b16 %v257, %v256
    %v288 = vpack.c.b16 %v259, %v258
    %v289 = vpack.c.b16 %v261, %v260
    %v290 = vpack.c.b16 %v263, %v262
    %v291 = vpack.c.b16 %v265, %v264
    %v292 = vpack.c.b16 %v267, %v266
    %v293 = vpack.c.b16 %v269, %v268
    %v294 = vpack.c.b16 %v271, %v270
    %v295 = vpack.c.b16 %v273, %v272
    %v296 = vpack.c.b16 %v275, %v274
    %v297 = vpack.c.b16 %v277, %v276
    %v298 = vpack.c.b16 %v279, %v278
    %v299 = vpack.c.b16 %v281, %v280
    %v300 = vpack.c.b16 %v283, %v282
    %v301 = vpack.c.b16 %v285, %v284
    %318 = vmatprep.subr.bf16.mxu0 0
    %319 = vmatpush1.bf16.msra.mxu0 %v293
    %320 = vmatprep.subr.bf16.mxu0 0
    %321 = vmatpush1.bf16.msra.mxu0 %v292
    %322 = vmatprep.subr.bf16.mxu0 0
    %323 = vmatpush1.bf16.msra.mxu0 %v291
    %324 = vmatprep.subr.bf16.mxu0 0
    %325 = vmatpush1.bf16.msra.mxu0 %v290
    %326 = vmatprep.subr.bf16.mxu0 0
    %327 = vmatpush1.bf16.msra.mxu0 %v289
    %328 = vmatprep.subr.bf16.mxu0 0
    %329 = vmatpush1.bf16.msra.mxu0 %v288
    %330 = vmatprep.subr.bf16.mxu0 0
    %331 = vmatpush1.bf16.msra.mxu0 %v287
    %332 = vmatprep.subr.bf16.mxu0 0
    %333 = vmatpush1.bf16.msra.mxu0 %v286
    %334 = vmatprep.subr.bf16.mxu0 0
    %335 = vmatpush2.bf16.msra.mxu0 %v301
    %336 = vmatprep.subr.bf16.mxu0 0
    %337 = vmatpush2.bf16.msra.mxu0 %v300
    %338 = vmatprep.subr.bf16.mxu0 0
    %339 = vmatpush2.bf16.msra.mxu0 %v299
    %340 = vmatprep.subr.bf16.mxu0 0
    %341 = vmatpush2.bf16.msra.mxu0 %v298
    %342 = vmatprep.subr.bf16.mxu0 0
    %343 = vmatpush2.bf16.msra.mxu0 %v297
    %344 = vmatprep.subr.bf16.mxu0 0
    %345 = vmatpush2.bf16.msra.mxu0 %v296
    %346 = vmatprep.subr.bf16.mxu0 0
    %347 = vmatpush2.bf16.msra.mxu0 %v295
    %348 = vmatprep.subr.bf16.mxu0 0
    %349 = vmatpush2.bf16.msra.mxu0 %v294
    %350 = vmatprep.mubr.bf16.mxu0 %v182
    %351 = vmatmul.mubr.bf16.gmra.mxu0 %v181
    %v352 = vpop.f32.mrf.mxu0
    %v353 = vadd.f32 %v220, %v352
    %v354 = vpop.f32.mrf.mxu0
    %v355 = vpop.f32.mrf.mxu0
    %v356 = vadd.f32 %v220, %v355
    %v357 = vpop.f32.mrf.mxu0
    %358 = vdwg.mxu0
    %v359 = vmax.f32 %v353, 0.0
    %v360 = vmax.f32 %v356, 0.0
    %361 = vst [vmem:[#allocation2] sm:$0xff] %v359
    %362 = vst [vmem:[#allocation2 + $0x8] sm:$0xff] %v360
    // Predicated region
    $region22: #{ffn.1} parent=1 // pred_check
      _
    $region23: #{ffn.1} parent=1 // pred_check_branch
      %364 = sbr.rel (0) target = $region25
    $region24: #{ffn.1} parent=1 // pred_region
      %s366 = ssub.s32 256, 256
      %367 = vsyncadd [#allocation3], %s366
      %s368 = sshll.u32 [#allocation2], 4
      %s369 = int_to_ptr.vmem [resolvable:$true] %s368
      %374 = dma.vmem_to_hbm [thread:$0]  %s369, 256, %s5, [#allocation3], 128, 128, 8
    $region25: #{ffn.1} parent=1 // pred_fallthru
      _
    // Predicated region
    $region26: #{ffn.1} parent=1 // pred_check
      _
    $region27: #{ffn.1} parent=1 // pred_check_branch
      %376 = sbr.rel (0) target = $region29
    $region28: #{ffn.1} parent=1 // pred_region
      %377 = dma.done [#allocation3], 256
    $region29: #{ffn.1} parent=1 // pred_fallthru
      _
    %378 = vsyncpa [#allocation3], 1

</llo_original>
